<compile_context>
chip_gen: v7x
topology: tpu7x:2x2x1
jax: 0.10.0
libtpu: 0.0.40
codegen_flags: <defaults>
</compile_context>

<pallas_src>
import jax
import jax.numpy as jnp
from jax.experimental import pallas as pl
from jax.experimental.pallas import tpu as pltpu

# ---------------- scaled-down model dims ----------------
MID_CH = 16          # stem output channels
FEAT_DIM = 64        # backbone feature dim (stands in for EfficientNet's 1280/1000)
HIST_DIM = 96        # color-histogram dim (stands in for 3*256 = 768)
HIDDEN = 128         # fc1 width (stands in for 1024)
NUM_CLASSES = 8
OUT_PAD = 128        # lane-dense padded output width (sliced back to NUM_CLASSES)
K_STEM = 3 * 3 * 3   # 27
K_STEM_PAD = 32      # padded stem-matmul K
BN_EPS = 1e-5


# ============ single fused kernel: whole forward pass, VMEM-resident ============
def fused_forward_kernel(patches_ref, pool_ref, hist_ref,
                         w_stem_ref, stem_scale_ref, stem_bias_ref,
                         w_pw_ref, pw_scale_ref, pw_bias_ref,
                         w1f_ref, w1h_ref, b1_ref,
                         w2_ref, b2_ref, o_ref):
    # --- stem conv (im2col matmul) + folded BN + SiLU ---
    s = jnp.dot(patches_ref[...], w_stem_ref[...],
                preferred_element_type=jnp.float32)              # (M, MID_CH) f32
    s = s * stem_scale_ref[...] + stem_bias_ref[...]
    s = s * jax.nn.sigmoid(s)                                    # SiLU (f32 VPU/EUP)

    # --- pointwise 1x1 conv + folded BN + SiLU ---
    f = jnp.dot(s.astype(jnp.bfloat16), w_pw_ref[...],
                preferred_element_type=jnp.float32)              # (M, FEAT) f32
    f = f * pw_scale_ref[...] + pw_bias_ref[...]
    f = f * jax.nn.sigmoid(f)

    # --- global average pool as MXU matmul: (B, M) @ (M, FEAT) ---
    feat = jnp.dot(pool_ref[...], f.astype(jnp.bfloat16),
                   preferred_element_type=jnp.float32)           # (B, FEAT)

    # --- fc1 on concat([feat, hist]) == feat@W1f + hist@W1h + b1 ---
    # BatchNorm1d (eval, running stats) is pre-folded into W1f/W1h/b1 on the host.
    h = (jnp.dot(feat.astype(jnp.bfloat16), w1f_ref[...],
                 preferred_element_type=jnp.float32)
         + jnp.dot(hist_ref[...], w1h_ref[...],
                   preferred_element_type=jnp.float32)
         + b1_ref[...])
    # ReLU; Dropout(0.4) is identity in eval mode
    h = jnp.maximum(h, 0.0)

    # --- fc2 (lane-dense, zero-padded to OUT_PAD columns) ---
    o_ref[...] = (jnp.dot(h.astype(jnp.bfloat16), w2_ref[...],
                          preferred_element_type=jnp.float32)
                  + b2_ref[...])


def _vmem_spec():
    return pl.BlockSpec(memory_space=pltpu.MemorySpace.VMEM)


# ---------------- glue: im2col (pure JAX reshaping) ----------------
def im2col(x_nhwc, k, stride, pad):
    B, H, W, C = x_nhwc.shape
    Hout = (H + 2 * pad - k) // stride + 1
    Wout = (W + 2 * pad - k) // stride + 1
    xp = jnp.pad(x_nhwc, ((0, 0), (pad, pad), (pad, pad), (0, 0)))
    cols = []
    for di in range(k):
        for dj in range(k):
            cols.append(xp[:, di:di + Hout * stride:stride,
                            dj:dj + Wout * stride:stride, :])
    p = jnp.concatenate(cols, axis=-1)                 # (B, Hout, Wout, k*k*C)
    return p.reshape(B * Hout * Wout, k * k * C), Hout, Wout


def fold_bn(gamma, beta, mean, var):
    scale = gamma / jnp.sqrt(var + BN_EPS)
    bias = beta - mean * scale
    return scale.reshape(1, -1), bias.reshape(1, -1)


# ---------------- parameter construction (deterministic, synthetic) ----------------
def init_params(key):
    ks = jax.random.split(key, 16)
    p = {}
    # stem conv: 3x3, Cin=3 -> MID_CH, stride 2, bias=False; weight (k*k*Cin, Cout),
    # K padded 27 -> 32 with zero rows.
    w_stem = 0.1 * jax.random.normal(ks[0], (K_STEM, MID_CH), jnp.float32)
    p["w_stem"] = jnp.pad(w_stem, ((0, K_STEM_PAD - K_STEM), (0, 0))).astype(jnp.bfloat16)
    g = 1.0 + 0.1 * jax.random.normal(ks[1], (MID_CH,), jnp.float32)
    b = 0.1 * jax.random.normal(ks[2], (MID_CH,), jnp.float32)
    m = 0.1 * jax.random.normal(ks[3], (MID_CH,), jnp.float32)
    v = jax.random.uniform(ks[4], (MID_CH,), jnp.float32, 0.5, 1.5)
    p["stem_scale"], p["stem_bias"] = fold_bn(g, b, m, v)

    # pointwise conv: 1x1, MID_CH -> FEAT_DIM, bias=False
    p["w_pw"] = (0.1 * jax.random.normal(ks[5], (MID_CH, FEAT_DIM), jnp.float32)
                 ).astype(jnp.bfloat16)
    g = 1.0 + 0.1 * jax.random.normal(ks[6], (FEAT_DIM,), jnp.float32)
    b = 0.1 * jax.random.normal(ks[7], (FEAT_DIM,), jnp.float32)
    m = 0.1 * jax.random.normal(ks[8], (FEAT_DIM,), jnp.float32)
    v = jax.random.uniform(ks[9], (FEAT_DIM,), jnp.float32, 0.5, 1.5)
    p["pw_scale"], p["pw_bias"] = fold_bn(g, b, m, v)

    # fc1: (FEAT_DIM + HIST_DIM) -> HIDDEN, stored split (feature rows / hist rows),
    # with BatchNorm1d(HIDDEN) (eval, running stats) folded in.
    w1f = 0.05 * jax.random.normal(ks[10], (FEAT_DIM, HIDDEN), jnp.float32)
    w1h = 0.05 * jax.random.normal(ks[11], (HIST_DIM, HIDDEN), jnp.float32)
    b1 = 0.05 * jax.random.normal(ks[12], (HIDDEN,), jnp.float32)
    bn_g = 1.0 + 0.1 * jax.random.normal(ks[13], (HIDDEN,), jnp.float32)
    bn_b = 0.1 * jax.random.normal(ks[14], (HIDDEN,), jnp.float32)
    bn_m = 0.1 * jax.random.normal(ks[15], (HIDDEN,), jnp.float32)
    bn_v = jnp.ones((HIDDEN,), jnp.float32)
    bn_scale = bn_g / jnp.sqrt(bn_v + BN_EPS)
    p["w1f"] = (w1f * bn_scale[None, :]).astype(jnp.bfloat16)
    p["w1h"] = (w1h * bn_scale[None, :]).astype(jnp.bfloat16)
    p["b1"] = ((b1 - bn_m) * bn_scale + bn_b).reshape(1, HIDDEN)

    # fc2: HIDDEN -> NUM_CLASSES, zero-padded to OUT_PAD lanes (lane-dense output).
    k2a, k2b = jax.random.split(jax.random.fold_in(key, 99))
    w2 = 0.05 * jax.random.normal(k2a, (HIDDEN, NUM_CLASSES), jnp.float32)
    b2 = 0.05 * jax.random.normal(k2b, (NUM_CLASSES,), jnp.float32)
    p["w2"] = jnp.pad(w2, ((0, 0), (0, OUT_PAD - NUM_CLASSES))).astype(jnp.bfloat16)
    p["b2"] = jnp.pad(b2, (0, OUT_PAD - NUM_CLASSES)).reshape(1, OUT_PAD)
    return p


# ---------------- full forward (one fused pallas_call) ----------------
def efficientnet_with_histogram_forward(x_nchw, hist, p):
    B = x_nchw.shape[0]
    x = jnp.transpose(x_nchw, (0, 2, 3, 1)).astype(jnp.float32)   # NCHW -> NHWC
    patches, ho, wo = im2col(x, k=3, stride=2, pad=1)             # (B*ho*wo, 27)
    patches = jnp.pad(patches, ((0, 0), (0, K_STEM_PAD - K_STEM)))  # K -> 32
    hw = ho * wo
    # block-diagonal averaging matrix: feat[b] = mean over that image's ho*wo rows
    pool = jnp.kron(jnp.eye(B, dtype=jnp.float32),
                    jnp.full((1, hw), 1.0 / hw, jnp.float32))     # (B, B*hw)

    args = (patches.astype(jnp.bfloat16), pool.astype(jnp.bfloat16),
            hist.astype(jnp.bfloat16),
            p["w_stem"], p["stem_scale"], p["stem_bias"],
            p["w_pw"], p["pw_scale"], p["pw_bias"],
            p["w1f"], p["w1h"], p["b1"],
            p["w2"], p["b2"])

    out = pl.pallas_call(
        fused_forward_kernel,
        out_shape=jax.ShapeDtypeStruct((B, OUT_PAD), jnp.float32),
        in_specs=[_vmem_spec() for _ in args],
        out_specs=_vmem_spec(),
    )(*args)
    return out[:, :NUM_CLASSES]


if __name__ == "__main__":
    key = jax.random.PRNGKey(0)
    kp, kx, kh = jax.random.split(key, 3)
    params = init_params(kp)

    B, Cin, H, W = 2, 3, 16, 16
    x = jax.random.normal(kx, (B, Cin, H, W), jnp.float32)        # PyTorch-style NCHW
    hist = jax.random.uniform(kh, (B, HIST_DIM), jnp.float32)     # color histogram

    out = efficientnet_with_histogram_forward(x, hist, params)
    jax.block_until_ready(out)
    assert out.shape == (B, NUM_CLASSES)
    print("KERNEL_OK")
</pallas_src>

<mosaic_0001>
module attributes {stable_mosaic.version = 11 : i64} {
  func.func @fused_forward_kernel(%arg0: memref<128x32xbf16, #tpu.memory_space<vmem>>, %arg1: memref<2x128xbf16, #tpu.memory_space<vmem>>, %arg2: memref<2x96xbf16, #tpu.memory_space<vmem>>, %arg3: memref<32x16xbf16, #tpu.memory_space<vmem>>, %arg4: memref<1x16xf32, #tpu.memory_space<vmem>>, %arg5: memref<1x16xf32, #tpu.memory_space<vmem>>, %arg6: memref<16x64xbf16, #tpu.memory_space<vmem>>, %arg7: memref<1x64xf32, #tpu.memory_space<vmem>>, %arg8: memref<1x64xf32, #tpu.memory_space<vmem>>, %arg9: memref<64x128xbf16, #tpu.memory_space<vmem>>, %arg10: memref<96x128xbf16, #tpu.memory_space<vmem>>, %arg11: memref<1x128xf32, #tpu.memory_space<vmem>>, %arg12: memref<128x128xbf16, #tpu.memory_space<vmem>>, %arg13: memref<1x128xf32, #tpu.memory_space<vmem>>, %arg14: memref<2x128xf32, #tpu.memory_space<vmem>>) attributes {dimension_semantics = [], scalar_prefetch = 0 : i64, scratch_operands = 0 : i64, tpu.core_type = #tpu.core_type<tc>} {
    %c0 = arith.constant 0 : index
    %c0_0 = arith.constant 0 : index
    %0 = vector.load %arg0[%c0, %c0_0] : memref<128x32xbf16, #tpu.memory_space<vmem>>, vector<128x32xbf16>
    %c0_1 = arith.constant 0 : index
    %c0_2 = arith.constant 0 : index
    %1 = vector.load %arg3[%c0_1, %c0_2] : memref<32x16xbf16, #tpu.memory_space<vmem>>, vector<32x16xbf16>
    %cst = arith.constant dense<0.000000e+00> : vector<128x16xf32>
    %2 = tpu.matmul %0, %1, %cst {dimension_numbers = #tpu.dot_dimension_numbers<[1], [0], [0], [1], [0, 0, 1, 1], [], []>} : vector<128x32xbf16>, vector<32x16xbf16>, vector<128x16xf32> -> vector<128x16xf32>
    %c0_3 = arith.constant 0 : index
    %c0_4 = arith.constant 0 : index
    %3 = vector.load %arg4[%c0_3, %c0_4] : memref<1x16xf32, #tpu.memory_space<vmem>>, vector<1x16xf32>
    %4 = vector.broadcast %3 : vector<1x16xf32> to vector<128x16xf32>
    %5 = arith.mulf %2, %4 : vector<128x16xf32>
    %c0_5 = arith.constant 0 : index
    %c0_6 = arith.constant 0 : index
    %6 = vector.load %arg5[%c0_5, %c0_6] : memref<1x16xf32, #tpu.memory_space<vmem>>, vector<1x16xf32>
    %7 = vector.broadcast %6 : vector<1x16xf32> to vector<128x16xf32>
    %8 = arith.addf %5, %7 : vector<128x16xf32>
    %9 = arith.negf %8 : vector<128x16xf32>
    %10 = math.exp %9 : vector<128x16xf32>
    %cst_7 = arith.constant 1.000000e+00 : f32
    %11 = vector.broadcast %cst_7 : f32 to vector<128x16xf32>
    %12 = arith.addf %11, %10 : vector<128x16xf32>
    %13 = arith.divf %11, %12 : vector<128x16xf32>
    %14 = arith.mulf %8, %13 : vector<128x16xf32>
    %15 = arith.truncf %14 : vector<128x16xf32> to vector<128x16xbf16>
    %c0_8 = arith.constant 0 : index
    %c0_9 = arith.constant 0 : index
    %16 = vector.load %arg6[%c0_8, %c0_9] : memref<16x64xbf16, #tpu.memory_space<vmem>>, vector<16x64xbf16>
    %cst_10 = arith.constant dense<0.000000e+00> : vector<128x64xf32>
    %17 = tpu.matmul %15, %16, %cst_10 {dimension_numbers = #tpu.dot_dimension_numbers<[1], [0], [0], [1], [0, 0, 1, 1], [], []>} : vector<128x16xbf16>, vector<16x64xbf16>, vector<128x64xf32> -> vector<128x64xf32>
    %c0_11 = arith.constant 0 : index
    %c0_12 = arith.constant 0 : index
    %18 = vector.load %arg7[%c0_11, %c0_12] : memref<1x64xf32, #tpu.memory_space<vmem>>, vector<1x64xf32>
    %19 = vector.broadcast %18 : vector<1x64xf32> to vector<128x64xf32>
    %20 = arith.mulf %17, %19 : vector<128x64xf32>
    %c0_13 = arith.constant 0 : index
    %c0_14 = arith.constant 0 : index
    %21 = vector.load %arg8[%c0_13, %c0_14] : memref<1x64xf32, #tpu.memory_space<vmem>>, vector<1x64xf32>
    %22 = vector.broadcast %21 : vector<1x64xf32> to vector<128x64xf32>
    %23 = arith.addf %20, %22 : vector<128x64xf32>
    %24 = arith.negf %23 : vector<128x64xf32>
    %25 = math.exp %24 : vector<128x64xf32>
    %cst_15 = arith.constant 1.000000e+00 : f32
    %26 = vector.broadcast %cst_15 : f32 to vector<128x64xf32>
    %27 = arith.addf %26, %25 : vector<128x64xf32>
    %28 = arith.divf %26, %27 : vector<128x64xf32>
    %29 = arith.mulf %23, %28 : vector<128x64xf32>
    %c0_16 = arith.constant 0 : index
    %c0_17 = arith.constant 0 : index
    %30 = vector.load %arg1[%c0_16, %c0_17] : memref<2x128xbf16, #tpu.memory_space<vmem>>, vector<2x128xbf16>
    %31 = arith.truncf %29 : vector<128x64xf32> to vector<128x64xbf16>
    %cst_18 = arith.constant dense<0.000000e+00> : vector<2x64xf32>
    %32 = tpu.matmul %30, %31, %cst_18 {dimension_numbers = #tpu.dot_dimension_numbers<[1], [0], [0], [1], [0, 0, 1, 1], [], []>} : vector<2x128xbf16>, vector<128x64xbf16>, vector<2x64xf32> -> vector<2x64xf32>
    %33 = arith.truncf %32 : vector<2x64xf32> to vector<2x64xbf16>
    %c0_19 = arith.constant 0 : index
    %c0_20 = arith.constant 0 : index
    %34 = vector.load %arg9[%c0_19, %c0_20] : memref<64x128xbf16, #tpu.memory_space<vmem>>, vector<64x128xbf16>
    %cst_21 = arith.constant dense<0.000000e+00> : vector<2x128xf32>
    %35 = tpu.matmul %33, %34, %cst_21 {dimension_numbers = #tpu.dot_dimension_numbers<[1], [0], [0], [1], [0, 0, 1, 1], [], []>} : vector<2x64xbf16>, vector<64x128xbf16>, vector<2x128xf32> -> vector<2x128xf32>
    %c0_22 = arith.constant 0 : index
    %c0_23 = arith.constant 0 : index
    %36 = vector.load %arg2[%c0_22, %c0_23] : memref<2x96xbf16, #tpu.memory_space<vmem>>, vector<2x96xbf16>
    %c0_24 = arith.constant 0 : index
    %c0_25 = arith.constant 0 : index
    %37 = vector.load %arg10[%c0_24, %c0_25] : memref<96x128xbf16, #tpu.memory_space<vmem>>, vector<96x128xbf16>
    %cst_26 = arith.constant dense<0.000000e+00> : vector<2x128xf32>
    %38 = tpu.matmul %36, %37, %cst_26 {dimension_numbers = #tpu.dot_dimension_numbers<[1], [0], [0], [1], [0, 0, 1, 1], [], []>} : vector<2x96xbf16>, vector<96x128xbf16>, vector<2x128xf32> -> vector<2x128xf32>
    %39 = arith.addf %35, %38 : vector<2x128xf32>
    %c0_27 = arith.constant 0 : index
    %c0_28 = arith.constant 0 : index
    %40 = vector.load %arg11[%c0_27, %c0_28] : memref<1x128xf32, #tpu.memory_space<vmem>>, vector<1x128xf32>
    %41 = vector.broadcast %40 : vector<1x128xf32> to vector<2x128xf32>
    %42 = arith.addf %39, %41 : vector<2x128xf32>
    %cst_29 = arith.constant 0.000000e+00 : f32
    %43 = vector.broadcast %cst_29 : f32 to vector<2x128xf32>
    %44 = arith.maximumf %42, %43 : vector<2x128xf32>
    %45 = arith.truncf %44 : vector<2x128xf32> to vector<2x128xbf16>
    %c0_30 = arith.constant 0 : index
    %c0_31 = arith.constant 0 : index
    %46 = vector.load %arg12[%c0_30, %c0_31] : memref<128x128xbf16, #tpu.memory_space<vmem>>, vector<128x128xbf16>
    %cst_32 = arith.constant dense<0.000000e+00> : vector<2x128xf32>
    %47 = tpu.matmul %45, %46, %cst_32 {dimension_numbers = #tpu.dot_dimension_numbers<[1], [0], [0], [1], [0, 0, 1, 1], [], []>} : vector<2x128xbf16>, vector<128x128xbf16>, vector<2x128xf32> -> vector<2x128xf32>
    %c0_33 = arith.constant 0 : index
    %c0_34 = arith.constant 0 : index
    %48 = vector.load %arg13[%c0_33, %c0_34] : memref<1x128xf32, #tpu.memory_space<vmem>>, vector<1x128xf32>
    %49 = vector.broadcast %48 : vector<1x128xf32> to vector<2x128xf32>
    %50 = arith.addf %47, %49 : vector<2x128xf32>
    %c0_35 = arith.constant 0 : index
    %c0_36 = arith.constant 0 : index
    %51 = vector.load %arg14[%c0_35, %c0_36] : memref<2x128xf32, #tpu.memory_space<vmem>>, vector<2x128xf32>
    tpu.vector_store %arg14[%c0_35, %c0_36], %50 {strides = array<i32>} : memref<2x128xf32, #tpu.memory_space<vmem>>, vector<2x128xf32>,
    return
  }
}

</mosaic_0001>

<llo_original>
// kernel: tpu_custom_call.1
$region0: #{tpu_custom_call.1}
  #allocation0 [shape = 'u32[]', space=smem, size = 0x4, offset = 0x4, fixed_abs, tag = 'smem constant byte address 0x4 - core index']
  #allocation1 [shape = 'u32[144,128]{1,0:T(1,128)}', space=vmem, size = 0x12000, scoped, tag = 'internal scratch']
  %s0 = inlined_call_operand.vmem [shape: bf16[128,32], index: 0, kind: input, shape index: {}]
  %s1 = inlined_call_operand.vmem [shape: bf16[2,128], index: 1, kind: input, shape index: {}]
  %s2 = inlined_call_operand.vmem [shape: bf16[2,96], index: 2, kind: input, shape index: {}]
  %s3 = inlined_call_operand.vmem [shape: bf16[32,16], index: 3, kind: input, shape index: {}]
  %s4 = inlined_call_operand.vmem [shape: f32[1,16], index: 4, kind: input, shape index: {}]
  %s5 = inlined_call_operand.vmem [shape: f32[1,16], index: 5, kind: input, shape index: {}]
  %s6 = inlined_call_operand.vmem [shape: bf16[16,64], index: 6, kind: input, shape index: {}]
  %s7 = inlined_call_operand.vmem [shape: f32[1,64], index: 7, kind: input, shape index: {}]
  %s8 = inlined_call_operand.vmem [shape: f32[1,64], index: 8, kind: input, shape index: {}]
  %s9 = inlined_call_operand.hbm [shape: bf16[64,128], index: 9, kind: input, shape index: {}]
  %s10 = inlined_call_operand.vmem [shape: bf16[96,128], index: 10, kind: input, shape index: {}]
  %s11 = inlined_call_operand.vmem [shape: f32[1,128], index: 11, kind: input, shape index: {}]
  %s12 = inlined_call_operand.vmem [shape: bf16[128,128], index: 12, kind: input, shape index: {}]
  %s13 = inlined_call_operand.vmem [shape: f32[1,128], index: 13, kind: input, shape index: {}]
  %s14 = inlined_call_operand.hbm [shape: f32[2,128], index: 14, kind: output, shape index: {}]
  %s15 = sld [smem:[#allocation0]]
  $region70: #{tpu_custom_call.1} parent=0
    _
  %s17 = ssub.s32 1, %s15
  %s18 = scalar_select 0, %s17, %s15
  $region1: #{tpu_custom_call.1} parent=0
    #allocation2 [shape = 'u8[16384]{0}', space=vmem, size = 0x4000, scoped, tag = 'input window, operand 9, single buffered']
    #allocation3 [shape = 's32[1]{0}', space=sflag, size = 0x4, scoped, tag = 'scoped memory for tpu_custom_call.1']
    #allocation4 [shape = 's32[1]{0}', space=sflag, size = 0x4, scoped, tag = 'scoped memory for tpu_custom_call.1']
    #allocation5 [shape = 'u8[1024]{0}', space=vmem, size = 0x400, scoped, tag = 'output window, operand 0, single buffered']
    %19 = vsyncpa [#allocation3], 0
    %20 = vsyncpa [#allocation4], 0
    // Predicated region
    $region2: #{tpu_custom_call.1} parent=1 // pred_check
      _
    $region3: #{tpu_custom_call.1} parent=1 // pred_check_branch
      %22 = sbr.rel (0) target = $region5
    $region4: #{tpu_custom_call.1} parent=1 // pred_region
      _
    $region5: #{tpu_custom_call.1} parent=1 // pred_fallthru
      _
    // Predicated region
    $region6: #{tpu_custom_call.1} parent=1 // pred_check
      _
    $region7: #{tpu_custom_call.1} parent=1 // pred_check_branch
      %24 = sbr.rel (0) target = $region9
    $region8: #{tpu_custom_call.1} parent=1 // pred_region
      _
    $region9: #{tpu_custom_call.1} parent=1 // pred_fallthru
      _
    // Predicated region
    $region10: #{tpu_custom_call.1} parent=1 // pred_check
      _
    $region11: #{tpu_custom_call.1} parent=1 // pred_check_branch
      %26 = sbr.rel (0) target = $region13
    $region12: #{tpu_custom_call.1} parent=1 // pred_region
      _
    $region13: #{tpu_custom_call.1} parent=1 // pred_fallthru
      _
    // Predicated region
    $region14: #{tpu_custom_call.1} parent=1 // pred_check
      _
    $region15: #{tpu_custom_call.1} parent=1 // pred_check_branch
      %28 = sbr.rel (0) target = $region17
    $region16: #{tpu_custom_call.1} parent=1 // pred_region
      _
    $region17: #{tpu_custom_call.1} parent=1 // pred_fallthru
      _
    // Predicated region
    $region18: #{tpu_custom_call.1} parent=1 // pred_check
      _
    $region19: #{tpu_custom_call.1} parent=1 // pred_check_branch
      %30 = sbr.rel (0) target = $region21
    $region20: #{tpu_custom_call.1} parent=1 // pred_region
      _
    $region21: #{tpu_custom_call.1} parent=1 // pred_fallthru
      _
    // Predicated region
    $region22: #{tpu_custom_call.1} parent=1 // pred_check
      _
    $region23: #{tpu_custom_call.1} parent=1 // pred_check_branch
      %32 = sbr.rel (0) target = $region25
    $region24: #{tpu_custom_call.1} parent=1 // pred_region
      _
    $region25: #{tpu_custom_call.1} parent=1 // pred_fallthru
      _
    // Predicated region
    $region26: #{tpu_custom_call.1} parent=1 // pred_check
      _
    $region27: #{tpu_custom_call.1} parent=1 // pred_check_branch
      %34 = sbr.rel (0) target = $region29
    $region28: #{tpu_custom_call.1} parent=1 // pred_region
      _
    $region29: #{tpu_custom_call.1} parent=1 // pred_fallthru
      _
    // Predicated region
    $region30: #{tpu_custom_call.1} parent=1 // pred_check
      _
    $region31: #{tpu_custom_call.1} parent=1 // pred_check_branch
      %36 = sbr.rel (0) target = $region33
    $region32: #{tpu_custom_call.1} parent=1 // pred_region
      _
    $region33: #{tpu_custom_call.1} parent=1 // pred_fallthru
      _
    // Predicated region
    $region34: #{tpu_custom_call.1} parent=1 // pred_check
      _
    $region35: #{tpu_custom_call.1} parent=1 // pred_check_branch
      %38 = sbr.rel (0) target = $region37
    $region36: #{tpu_custom_call.1} parent=1 // pred_region
      _
    $region37: #{tpu_custom_call.1} parent=1 // pred_fallthru
      _
    // Predicated region
    $region38: #{tpu_custom_call.1} parent=1 // pred_check
      _
    $region39: #{tpu_custom_call.1} parent=1 // pred_check_branch
      %40 = sbr.rel (0) target = $region41
    $region40: #{tpu_custom_call.1} parent=1 // pred_region
      %s42 = ssub.s32 512, 512
      %43 = vsyncadd [#allocation3], %s42
      %s44 = sshll.u32 [#allocation2], 4
      %s45 = int_to_ptr.vmem [resolvable:$true] %s44
      %50 = dma.hbm_to_vmem [thread:$0]  %s9, 512, %s45, [#allocation3], 64, 64, 4
    $region41: #{tpu_custom_call.1} parent=1 // pred_fallthru
      _
    // Predicated region
    $region42: #{tpu_custom_call.1} parent=1 // pred_check
      _
    $region43: #{tpu_custom_call.1} parent=1 // pred_check_branch
      %52 = sbr.rel (0) target = $region45
    $region44: #{tpu_custom_call.1} parent=1 // pred_region
      _
    $region45: #{tpu_custom_call.1} parent=1 // pred_fallthru
      _
    // Predicated region
    $region46: #{tpu_custom_call.1} parent=1 // pred_check
      _
    $region47: #{tpu_custom_call.1} parent=1 // pred_check_branch
      %54 = sbr.rel (0) target = $region49
    $region48: #{tpu_custom_call.1} parent=1 // pred_region
      _
    $region49: #{tpu_custom_call.1} parent=1 // pred_fallthru
      _
    // Predicated region
    $region50: #{tpu_custom_call.1} parent=1 // pred_check
      _
    $region51: #{tpu_custom_call.1} parent=1 // pred_check_branch
      %56 = sbr.rel (0) target = $region53
    $region52: #{tpu_custom_call.1} parent=1 // pred_region
      _
    $region53: #{tpu_custom_call.1} parent=1 // pred_fallthru
      _
    // Predicated region
    $region54: #{tpu_custom_call.1} parent=1 // pred_check
      _
    $region55: #{tpu_custom_call.1} parent=1 // pred_check_branch
      %58 = sbr.rel (0) target = $region57
    $region56: #{tpu_custom_call.1} parent=1 // pred_region
      _
    $region57: #{tpu_custom_call.1} parent=1 // pred_fallthru
      _
    // Predicated region
    $region58: #{tpu_custom_call.1} parent=1 // pred_check
      _
    $region59: #{tpu_custom_call.1} parent=1 // pred_check_branch
      %60 = sbr.rel (0) target = $region61
    $region60: #{tpu_custom_call.1} parent=1 // pred_region
      %61 = dma.done [#allocation3], 512
    $region61: #{tpu_custom_call.1} parent=1 // pred_fallthru
      _
    %v63 = vld [vmem:[%s0] sm:$0xf]
    %v64 = vld [vmem:[%s0 + $0x4] sm:$0xf]
    %v65 = vld [vmem:[%s0 + $0x8] sm:$0xf]
    %v66 = vld [vmem:[%s0 + $0xc] sm:$0xf]
    %v67 = vld [vmem:[%s0 + $0x10] sm:$0xf]
    %v68 = vld [vmem:[%s0 + $0x14] sm:$0xf]
    %v69 = vld [vmem:[%s0 + $0x18] sm:$0xf]
    %v70 = vld [vmem:[%s0 + $0x1c] sm:$0xf]
    %v71 = vld [vmem:[%s0 + $0x20] sm:$0xf]
    %v72 = vld [vmem:[%s0 + $0x24] sm:$0xf]
    %v73 = vld [vmem:[%s0 + $0x28] sm:$0xf]
    %v74 = vld [vmem:[%s0 + $0x2c] sm:$0xf]
    %v75 = vld [vmem:[%s0 + $0x30] sm:$0xf]
    %v76 = vld [vmem:[%s0 + $0x34] sm:$0xf]
    %v77 = vld [vmem:[%s0 + $0x38] sm:$0xf]
    %v78 = vld [vmem:[%s0 + $0x3c] sm:$0xf]
    %v79 = vld [vmem:[%s3] sm:$0xf]
    %v80 = vld [vmem:[%s3 + $0x4] sm:$0xf]
    %v81 = vld [vmem:[%s3 + $0x8] sm:$0xf]
    %v82 = vld [vmem:[%s3 + $0xc] sm:$0xf]
    %v99 = vunpack.c.l.b16 %v63
    %v100 = vunpack.c.l.b16 %v64
    %v101 = vunpack.c.l.b16 %v65
    %v102 = vunpack.c.l.b16 %v66
    %v103 = vunpack.c.l.b16 %v67
    %v104 = vunpack.c.l.b16 %v68
    %v105 = vunpack.c.l.b16 %v69
    %v106 = vunpack.c.l.b16 %v70
    %v107 = vunpack.c.l.b16 %v71
    %v108 = vunpack.c.l.b16 %v72
    %v109 = vunpack.c.l.b16 %v73
    %v110 = vunpack.c.l.b16 %v74
    %v111 = vunpack.c.l.b16 %v75
    %v112 = vunpack.c.l.b16 %v76
    %v113 = vunpack.c.l.b16 %v77
    %v114 = vunpack.c.l.b16 %v78
    %v115 = vpack.c.b16 %v100, %v99
    %v116 = vpack.c.b16 %v102, %v101
    %v117 = vpack.c.b16 %v104, %v103
    %v118 = vpack.c.b16 %v106, %v105
    %v119 = vpack.c.b16 %v108, %v107
    %v120 = vpack.c.b16 %v110, %v109
    %v121 = vpack.c.b16 %v112, %v111
    %v122 = vpack.c.b16 %v114, %v113
    %v127 = vunpack.c.l.b16 %v79
    %v128 = vunpack.c.l.b16 %v80
    %v129 = vunpack.c.l.b16 %v81
    %v130 = vunpack.c.l.b16 %v82
    %v131 = vpack.c.b16 %v128, %v127
    %v132 = vpack.c.b16 %v130, %v129
    %vm135 = vcmask 261120
    %v137 = vsel %vm135, %v115, 0
    %v140 = vsel %vm135, %v116, 0
    %v143 = vsel %vm135, %v117, 0
    %v146 = vsel %vm135, %v118, 0
    %v149 = vsel %vm135, %v119, 0
    %v152 = vsel %vm135, %v120, 0
    %v155 = vsel %vm135, %v121, 0
    %v158 = vsel %vm135, %v122, 0
    %160 = vmatprep.subr.bf16.mxu0 0
    %161 = vmatpush1.bf16.msra.mxu0 %v131
    %162 = vmatprep.subr.bf16.mxu0 0
    %163 = vmatpush1.bf16.msra.mxu0 %v132
    %164 = vmatprep.subr.bf16.mxu0 0
    %165 = vmatpush1.bf16.msra.mxu0 0
    %166 = vmatprep.subr.bf16.mxu0 0
    %167 = vmatpush1.bf16.msra.mxu0 0
    %168 = vmatprep.subr.bf16.mxu0 0
    %169 = vmatpush1.bf16.msra.mxu0 0
    %170 = vmatprep.subr.bf16.mxu0 0
    %171 = vmatpush1.bf16.msra.mxu0 0
    %172 = vmatprep.subr.bf16.mxu0 0
    %173 = vmatpush1.bf16.msra.mxu0 0
    %174 = vmatprep.subr.bf16.mxu0 0
    %175 = vmatpush1.bf16.msra.mxu0 0
    %176 = vmatprep.subr.bf16.mxu0 0
    %177 = vmatpush1.bf16.msra.mxu0 0
    %178 = vmatprep.subr.bf16.mxu0 0
    %179 = vmatpush1.bf16.msra.mxu0 0
    %180 = vmatprep.subr.bf16.mxu0 0
    %181 = vmatpush1.bf16.msra.mxu0 0
    %182 = vmatprep.subr.bf16.mxu0 0
    %183 = vmatpush1.bf16.msra.mxu0 0
    %184 = vmatprep.subr.bf16.mxu0 0
    %185 = vmatpush1.bf16.msra.mxu0 0
    %186 = vmatprep.subr.bf16.mxu0 0
    %187 = vmatpush1.bf16.msra.mxu0 0
    %188 = vmatprep.subr.bf16.mxu0 0
    %189 = vmatpush1.bf16.msra.mxu0 0
    %190 = vmatprep.subr.bf16.mxu0 0
    %191 = vmatpush1.bf16.msra.mxu0 0
    %192 = vmatprep.mubr.bf16.mxu0 0
    %193 = vmatmul.mubr.bf16.gmra.mrb[0].mxu0 %v137
    %v194 = vpop.f32.mrb[0].mxu0
    %v195 = vadd.f32 0.0, %v194
    %v196 = vpop.f32.mrb[0].mxu0
    %v197 = vpop.f32.mrb[0].mxu0
    %v198 = vadd.f32 0.0, %v197
    %v199 = vpop.f32.mrb[0].mxu0
    %200 = vmatprep.mubr.bf16.mxu0 0
    %201 = vmatmul.mubr.bf16.gmra.mrb[0].mxu0 %v140
    %v202 = vpop.f32.mrb[0].mxu0
    %v203 = vadd.f32 0.0, %v202
    %v204 = vpop.f32.mrb[0].mxu0
    %v205 = vpop.f32.mrb[0].mxu0
    %v206 = vadd.f32 0.0, %v205
    %v207 = vpop.f32.mrb[0].mxu0
    %208 = vmatprep.mubr.bf16.mxu0 0
    %209 = vmatmul.mubr.bf16.gmra.mrb[0].mxu0 %v143
    %v210 = vpop.f32.mrb[0].mxu0
    %v211 = vadd.f32 0.0, %v210
    %v212 = vpop.f32.mrb[0].mxu0
    %v213 = vpop.f32.mrb[0].mxu0
    %v214 = vadd.f32 0.0, %v213
    %v215 = vpop.f32.mrb[0].mxu0
    %216 = vmatprep.mubr.bf16.mxu0 0
    %217 = vmatmul.mubr.bf16.gmra.mrb[0].mxu0 %v146
    %v218 = vpop.f32.mrb[0].mxu0
    %v219 = vadd.f32 0.0, %v218
    %v220 = vpop.f32.mrb[0].mxu0
    %v221 = vpop.f32.mrb[0].mxu0
    %v222 = vadd.f32 0.0, %v221
    %v223 = vpop.f32.mrb[0].mxu0
    %224 = vmatprep.mubr.bf16.mxu0 0
    %225 = vmatmul.mubr.bf16.gmra.mrb[0].mxu0 %v149
    %v226 = vpop.f32.mrb[0].mxu0
    %v227 = vadd.f32 0.0, %v226
    %v228 = vpop.f32.mrb[0].mxu0
    %v229 = vpop.f32.mrb[0].mxu0
    %v230 = vadd.f32 0.0, %v229
    %v231 = vpop.f32.mrb[0].mxu0
    %232 = vmatprep.mubr.bf16.mxu0 0
    %233 = vmatmul.mubr.bf16.gmra.mrb[0].mxu0 %v152
    %v234 = vpop.f32.mrb[0].mxu0
    %v235 = vadd.f32 0.0, %v234
    %v236 = vpop.f32.mrb[0].mxu0
    %v237 = vpop.f32.mrb[0].mxu0
    %v238 = vadd.f32 0.0, %v237
    %v239 = vpop.f32.mrb[0].mxu0
    %240 = vmatprep.mubr.bf16.mxu0 0
    %241 = vmatmul.mubr.bf16.gmra.mrb[0].mxu0 %v155
    %v242 = vpop.f32.mrb[0].mxu0
    %v243 = vadd.f32 0.0, %v242
    %v244 = vpop.f32.mrb[0].mxu0
    %v245 = vpop.f32.mrb[0].mxu0
    %v246 = vadd.f32 0.0, %v245
    %v247 = vpop.f32.mrb[0].mxu0
    %248 = vmatprep.mubr.bf16.mxu0 0
    %249 = vmatmul.mubr.bf16.gmra.mrb[0].mxu0 %v158
    %v250 = vpop.f32.mrb[0].mxu0
    %v251 = vadd.f32 0.0, %v250
    %v252 = vpop.f32.mrb[0].mxu0
    %v253 = vpop.f32.mrb[0].mxu0
    %v254 = vadd.f32 0.0, %v253
    %v255 = vpop.f32.mrb[0].mxu0
    %256 = vdwg.mxu0
    %v257 = vld [vmem:[%s4] sm:$0x1]
    %v259 = vlaneseq
    %v260 = vshrl.u32 %v259, 7
    %v261 = vsub.s32 0, %v260
    %v262 = vrot.slane %v257, %v261
    %v264 = vmul.f32 %v195, %v262
    %v265 = vmul.f32 %v198, %v262
    %v266 = vmul.f32 %v203, %v262
    %v267 = vmul.f32 %v206, %v262
    %v268 = vmul.f32 %v211, %v262
    %v269 = vmul.f32 %v214, %v262
    %v270 = vmul.f32 %v219, %v262
    %v271 = vmul.f32 %v222, %v262
    %v272 = vmul.f32 %v227, %v262
    %v273 = vmul.f32 %v230, %v262
    %v274 = vmul.f32 %v235, %v262
    %v275 = vmul.f32 %v238, %v262
    %v276 = vmul.f32 %v243, %v262
    %v277 = vmul.f32 %v246, %v262
    %v278 = vmul.f32 %v251, %v262
    %v279 = vmul.f32 %v254, %v262
    %v280 = vld [vmem:[%s5] sm:$0x1]
    %v282 = vlaneseq
    %v283 = vshrl.u32 %v282, 7
    %v284 = vsub.s32 0, %v283
    %v285 = vrot.slane %v280, %v284
    %v287 = vadd.f32 %v264, %v285
    %v288 = vadd.f32 %v265, %v285
    %v289 = vadd.f32 %v266, %v285
    %v290 = vadd.f32 %v267, %v285
    %v291 = vadd.f32 %v268, %v285
    %v292 = vadd.f32 %v269, %v285
    %v293 = vadd.f32 %v270, %v285
    %v294 = vadd.f32 %v271, %v285
    %v295 = vadd.f32 %v272, %v285
    %v296 = vadd.f32 %v273, %v285
    %v297 = vadd.f32 %v274, %v285
    %v298 = vadd.f32 %v275, %v285
    %v299 = vadd.f32 %v276, %v285
    %v300 = vadd.f32 %v277, %v285
    %v301 = vadd.f32 %v278, %v285
    %v302 = vadd.f32 %v279, %v285
    %v303 = vxor.u32 %v287, 2147483648
    %v304 = vxor.u32 %v288, 2147483648
    %v305 = vxor.u32 %v289, 2147483648
    %v306 = vxor.u32 %v290, 2147483648
    %v307 = vxor.u32 %v291, 2147483648
    %v308 = vxor.u32 %v292, 2147483648
    %v309 = vxor.u32 %v293, 2147483648
    %v310 = vxor.u32 %v294, 2147483648
    %v311 = vxor.u32 %v295, 2147483648
    %v312 = vxor.u32 %v296, 2147483648
    %v313 = vxor.u32 %v297, 2147483648
    %v314 = vxor.u32 %v298, 2147483648
    %v315 = vxor.u32 %v299, 2147483648
    %v316 = vxor.u32 %v300, 2147483648
    %v317 = vxor.u32 %v301, 2147483648
    %v318 = vxor.u32 %v302, 2147483648
    %v319 = vmul.f32 %v303, 1.442695
    %v320 = vpow.pop %v319
    %v321 = vmul.f32 %v304, 1.442695
    %v322 = vpow.pop %v321
    %v323 = vmul.f32 %v305, 1.442695
    %v324 = vpow.pop %v323
    %v325 = vmul.f32 %v306, 1.442695
    %v326 = vpow.pop %v325
    %v327 = vmul.f32 %v307, 1.442695
    %v328 = vpow.pop %v327
    %v329 = vmul.f32 %v308, 1.442695
    %v330 = vpow.pop %v329
    %v331 = vmul.f32 %v309, 1.442695
    %v332 = vpow.pop %v331
    %v333 = vmul.f32 %v310, 1.442695
    %v334 = vpow.pop %v333
    %v335 = vmul.f32 %v311, 1.442695
    %v336 = vpow.pop %v335
    %v337 = vmul.f32 %v312, 1.442695
    %v338 = vpow.pop %v337
    %v339 = vmul.f32 %v313, 1.442695
    %v340 = vpow.pop %v339
    %v341 = vmul.f32 %v314, 1.442695
    %v342 = vpow.pop %v341
    %v343 = vmul.f32 %v315, 1.442695
    %v344 = vpow.pop %v343
    %v345 = vmul.f32 %v316, 1.442695
    %v346 = vpow.pop %v345
    %v347 = vmul.f32 %v317, 1.442695
    %v348 = vpow.pop %v347
    %v349 = vmul.f32 %v318, 1.442695
    %v350 = vpow.pop %v349
    %v351 = vadd.f32 %v320, 1.0
    %v352 = vadd.f32 %v322, 1.0
    %v353 = vadd.f32 %v324, 1.0
    %v354 = vadd.f32 %v326, 1.0
    %v355 = vadd.f32 %v328, 1.0
    %v356 = vadd.f32 %v330, 1.0
    %v357 = vadd.f32 %v332, 1.0
    %v358 = vadd.f32 %v334, 1.0
    %v359 = vadd.f32 %v336, 1.0
    %v360 = vadd.f32 %v338, 1.0
    %v361 = vadd.f32 %v340, 1.0
    %v362 = vadd.f32 %v342, 1.0
    %v363 = vadd.f32 %v344, 1.0
    %v364 = vadd.f32 %v346, 1.0
    %v365 = vadd.f32 %v348, 1.0
    %v366 = vadd.f32 %v350, 1.0
    %v367 = vrcp.pop %v351
    %v368 = vmul.f32 1.0, %v367
    %v369 = vrcp.pop %v352
    %v370 = vmul.f32 1.0, %v369
    %v371 = vrcp.pop %v353
    %v372 = vmul.f32 1.0, %v371
    %v373 = vrcp.pop %v354
    %v374 = vmul.f32 1.0, %v373
    %v375 = vrcp.pop %v355
    %v376 = vmul.f32 1.0, %v375
    %v377 = vrcp.pop %v356
    %v378 = vmul.f32 1.0, %v377
    %v379 = vrcp.pop %v357
    %v380 = vmul.f32 1.0, %v379
    %v381 = vrcp.pop %v358
    %v382 = vmul.f32 1.0, %v381
    %v383 = vrcp.pop %v359
    %v384 = vmul.f32 1.0, %v383
    %v385 = vrcp.pop %v360
    %v386 = vmul.f32 1.0, %v385
    %v387 = vrcp.pop %v361
    %v388 = vmul.f32 1.0, %v387
    %v389 = vrcp.pop %v362
    %v390 = vmul.f32 1.0, %v389
    %v391 = vrcp.pop %v363
    %v392 = vmul.f32 1.0, %v391
    %v393 = vrcp.pop %v364
    %v394 = vmul.f32 1.0, %v393
    %v395 = vrcp.pop %v365
    %v396 = vmul.f32 1.0, %v395
    %v397 = vrcp.pop %v366
    %v398 = vmul.f32 1.0, %v397
    %v399 = vmul.f32 %v287, %v368
    %v400 = vmul.f32 %v288, %v370
    %v401 = vmul.f32 %v289, %v372
    %v402 = vmul.f32 %v290, %v374
    %v403 = vmul.f32 %v291, %v376
    %v404 = vmul.f32 %v292, %v378
    %v405 = vmul.f32 %v293, %v380
    %v406 = vmul.f32 %v294, %v382
    %v407 = vmul.f32 %v295, %v384
    %v408 = vmul.f32 %v296, %v386
    %v409 = vmul.f32 %v297, %v388
    %v410 = vmul.f32 %v298, %v390
    %v411 = vmul.f32 %v299, %v392
    %v412 = vmul.f32 %v300, %v394
    %v413 = vmul.f32 %v301, %v396
    %v414 = vmul.f32 %v302, %v398
    %v415 = vpack.c.bf16 %v400, %v399
    %v416 = vpack.c.bf16 %v402, %v401
    %v417 = vpack.c.bf16 %v404, %v403
    %v418 = vpack.c.bf16 %v406, %v405
    %v419 = vpack.c.bf16 %v408, %v407
    %v420 = vpack.c.bf16 %v410, %v409
    %v421 = vpack.c.bf16 %v412, %v411
    %v422 = vpack.c.bf16 %v414, %v413
    %v423 = vld [vmem:[%s6] sm:$0xf]
    %v424 = vld [vmem:[%s6 + $0x4] sm:$0xf]
    %v427 = vunpack.c.l.b16 %v423
    %v428 = vunpack.c.l.b16 %v424
    %v429 = vpack.c.b16 %v428, %v427
    %vm431 = vcmask 130048
    %v433 = vsel %vm431, %v415, 0
    %v436 = vsel %vm431, %v416, 0
    %v439 = vsel %vm431, %v417, 0
    %v442 = vsel %vm431, %v418, 0
    %v445 = vsel %vm431, %v419, 0
    %v448 = vsel %vm431, %v420, 0
    %v451 = vsel %vm431, %v421, 0
    %v454 = vsel %vm431, %v422, 0
    %456 = vmatprep.subr.bf16.mxu0 0
    %457 = vmatpush1.bf16.msra.mxu0 %v429
    %458 = vmatprep.subr.bf16.mxu0 0
    %459 = vmatpush1.bf16.msra.mxu0 0
    %460 = vmatprep.subr.bf16.mxu0 0
    %461 = vmatpush1.bf16.msra.mxu0 0
    %462 = vmatprep.subr.bf16.mxu0 0
    %463 = vmatpush1.bf16.msra.mxu0 0
    %464 = vmatprep.subr.bf16.mxu0 0
    %465 = vmatpush1.bf16.msra.mxu0 0
    %466 = vmatprep.subr.bf16.mxu0 0
    %467 = vmatpush1.bf16.msra.mxu0 0
    %468 = vmatprep.subr.bf16.mxu0 0
    %469 = vmatpush1.bf16.msra.mxu0 0
    %470 = vmatprep.subr.bf16.mxu0 0
    %471 = vmatpush1.bf16.msra.mxu0 0
    %472 = vmatprep.subr.bf16.mxu0 0
    %473 = vmatpush1.bf16.msra.mxu0 0
    %474 = vmatprep.subr.bf16.mxu0 0
    %475 = vmatpush1.bf16.msra.mxu0 0
    %476 = vmatprep.subr.bf16.mxu0 0
    %477 = vmatpush1.bf16.msra.mxu0 0
    %478 = vmatprep.subr.bf16.mxu0 0
    %479 = vmatpush1.bf16.msra.mxu0 0
    %480 = vmatprep.subr.bf16.mxu0 0
    %481 = vmatpush1.bf16.msra.mxu0 0
    %482 = vmatprep.subr.bf16.mxu0 0
    %483 = vmatpush1.bf16.msra.mxu0 0
    %484 = vmatprep.subr.bf16.mxu0 0
    %485 = vmatpush1.bf16.msra.mxu0 0
    %486 = vmatprep.subr.bf16.mxu0 0
    %487 = vmatpush1.bf16.msra.mxu0 0
    %488 = vmatprep.mubr.bf16.mxu0 0
    %489 = vmatmul.mubr.bf16.gmra.mrb[0].mxu0 %v433
    %v490 = vpop.f32.mrb[0].mxu0
    %v491 = vadd.f32 0.0, %v490
    %v492 = vpop.f32.mrb[0].mxu0
    %v493 = vpop.f32.mrb[0].mxu0
    %v494 = vadd.f32 0.0, %v493
    %v495 = vpop.f32.mrb[0].mxu0
    %496 = vmatprep.mubr.bf16.mxu0 0
    %497 = vmatmul.mubr.bf16.gmra.mrb[0].mxu0 %v436
    %v498 = vpop.f32.mrb[0].mxu0
    %v499 = vadd.f32 0.0, %v498
    %v500 = vpop.f32.mrb[0].mxu0
    %v501 = vpop.f32.mrb[0].mxu0
    %v502 = vadd.f32 0.0, %v501
    %v503 = vpop.f32.mrb[0].mxu0
    %504 = vmatprep.mubr.bf16.mxu0 0
    %505 = vmatmul.mubr.bf16.gmra.mrb[0].mxu0 %v439
    %v506 = vpop.f32.mrb[0].mxu0
    %v507 = vadd.f32 0.0, %v506
    %v508 = vpop.f32.mrb[0].mxu0
    %v509 = vpop.f32.mrb[0].mxu0
    %v510 = vadd.f32 0.0, %v509
    %v511 = vpop.f32.mrb[0].mxu0
    %512 = vmatprep.mubr.bf16.mxu0 0
    %513 = vmatmul.mubr.bf16.gmra.mrb[0].mxu0 %v442
    %v514 = vpop.f32.mrb[0].mxu0
    %v515 = vadd.f32 0.0, %v514
    %v516 = vpop.f32.mrb[0].mxu0
    %v517 = vpop.f32.mrb[0].mxu0
    %v518 = vadd.f32 0.0, %v517
    %v519 = vpop.f32.mrb[0].mxu0
    %520 = vmatprep.mubr.bf16.mxu0 0
    %521 = vmatmul.mubr.bf16.gmra.mrb[0].mxu0 %v445
    %v522 = vpop.f32.mrb[0].mxu0
    %v523 = vadd.f32 0.0, %v522
    %v524 = vpop.f32.mrb[0].mxu0
    %v525 = vpop.f32.mrb[0].mxu0
    %v526 = vadd.f32 0.0, %v525
    %v527 = vpop.f32.mrb[0].mxu0
    %528 = vmatprep.mubr.bf16.mxu0 0
    %529 = vmatmul.mubr.bf16.gmra.mrb[0].mxu0 %v448
    %v530 = vpop.f32.mrb[0].mxu0
    %v531 = vadd.f32 0.0, %v530
    %v532 = vpop.f32.mrb[0].mxu0
    %v533 = vpop.f32.mrb[0].mxu0
    %v534 = vadd.f32 0.0, %v533
    %v535 = vpop.f32.mrb[0].mxu0
    %536 = vmatprep.mubr.bf16.mxu0 0
    %537 = vmatmul.mubr.bf16.gmra.mrb[0].mxu0 %v451
    %v538 = vpop.f32.mrb[0].mxu0
    %v539 = vadd.f32 0.0, %v538
    %v540 = vpop.f32.mrb[0].mxu0
    %v541 = vpop.f32.mrb[0].mxu0
    %v542 = vadd.f32 0.0, %v541
    %v543 = vpop.f32.mrb[0].mxu0
    %544 = vmatprep.mubr.bf16.mxu0 0
    %545 = vmatmul.mubr.bf16.gmra.mrb[0].mxu0 %v454
    %v546 = vpop.f32.mrb[0].mxu0
    %v547 = vadd.f32 0.0, %v546
    %v548 = vpop.f32.mrb[0].mxu0
    %v549 = vpop.f32.mrb[0].mxu0
    %v550 = vadd.f32 0.0, %v549
    %v551 = vpop.f32.mrb[0].mxu0
    %552 = vdwg.mxu0
    %v553 = vld [vmem:[%s7] sm:$0x1]
    %v555 = vlaneseq
    %v556 = vshrl.u32 %v555, 7
    %v557 = vsub.s32 0, %v556
    %v558 = vrot.slane %v553, %v557
    %v560 = vmul.f32 %v491, %v558
    %v561 = vmul.f32 %v494, %v558
    %v562 = vmul.f32 %v499, %v558
    %v563 = vmul.f32 %v502, %v558
    %v564 = vmul.f32 %v507, %v558
    %v565 = vmul.f32 %v510, %v558
    %v566 = vmul.f32 %v515, %v558
    %v567 = vmul.f32 %v518, %v558
    %v568 = vmul.f32 %v523, %v558
    %v569 = vmul.f32 %v526, %v558
    %v570 = vmul.f32 %v531, %v558
    %v571 = vmul.f32 %v534, %v558
    %v572 = vmul.f32 %v539, %v558
    %v573 = vmul.f32 %v542, %v558
    %v574 = vmul.f32 %v547, %v558
    %v575 = vmul.f32 %v550, %v558
    %v576 = vld [vmem:[%s8] sm:$0x1]
    %v578 = vlaneseq
    %v579 = vshrl.u32 %v578, 7
    %v580 = vsub.s32 0, %v579
    %v581 = vrot.slane %v576, %v580
    %v583 = vadd.f32 %v560, %v581
    %v584 = vadd.f32 %v561, %v581
    %v585 = vadd.f32 %v562, %v581
    %v586 = vadd.f32 %v563, %v581
    %v587 = vadd.f32 %v564, %v581
    %v588 = vadd.f32 %v565, %v581
    %v589 = vadd.f32 %v566, %v581
    %v590 = vadd.f32 %v567, %v581
    %v591 = vadd.f32 %v568, %v581
    %v592 = vadd.f32 %v569, %v581
    %v593 = vadd.f32 %v570, %v581
    %v594 = vadd.f32 %v571, %v581
    %v595 = vadd.f32 %v572, %v581
    %v596 = vadd.f32 %v573, %v581
    %v597 = vadd.f32 %v574, %v581
    %v598 = vadd.f32 %v575, %v581
    %v599 = vxor.u32 %v583, 2147483648
    %v600 = vxor.u32 %v584, 2147483648
    %v601 = vxor.u32 %v585, 2147483648
    %v602 = vxor.u32 %v586, 2147483648
    %v603 = vxor.u32 %v587, 2147483648
    %v604 = vxor.u32 %v588, 2147483648
    %v605 = vxor.u32 %v589, 2147483648
    %v606 = vxor.u32 %v590, 2147483648
    %v607 = vxor.u32 %v591, 2147483648
    %v608 = vxor.u32 %v592, 2147483648
    %v609 = vxor.u32 %v593, 2147483648
    %v610 = vxor.u32 %v594, 2147483648
    %v611 = vxor.u32 %v595, 2147483648
    %v612 = vxor.u32 %v596, 2147483648
    %v613 = vxor.u32 %v597, 2147483648
    %v614 = vxor.u32 %v598, 2147483648
    %v615 = vmul.f32 %v599, 1.442695
    %v616 = vpow.pop %v615
    %v617 = vmul.f32 %v600, 1.442695
    %v618 = vpow.pop %v617
    %v619 = vmul.f32 %v601, 1.442695
    %v620 = vpow.pop %v619
    %v621 = vmul.f32 %v602, 1.442695
    %v622 = vpow.pop %v621
    %v623 = vmul.f32 %v603, 1.442695
    %v624 = vpow.pop %v623
    %v625 = vmul.f32 %v604, 1.442695
    %v626 = vpow.pop %v625
    %v627 = vmul.f32 %v605, 1.442695
    %v628 = vpow.pop %v627
    %v629 = vmul.f32 %v606, 1.442695
    %v630 = vpow.pop %v629
    %v631 = vmul.f32 %v607, 1.442695
    %v632 = vpow.pop %v631
    %v633 = vmul.f32 %v608, 1.442695
    %v634 = vpow.pop %v633
    %v635 = vmul.f32 %v609, 1.442695
    %v636 = vpow.pop %v635
    %v637 = vmul.f32 %v610, 1.442695
    %v638 = vpow.pop %v637
    %v639 = vmul.f32 %v611, 1.442695
    %v640 = vpow.pop %v639
    %v641 = vmul.f32 %v612, 1.442695
    %v642 = vpow.pop %v641
    %v643 = vmul.f32 %v613, 1.442695
    %v644 = vpow.pop %v643
    %v645 = vmul.f32 %v614, 1.442695
    %v646 = vpow.pop %v645
    %v647 = vadd.f32 %v616, 1.0
    %v648 = vadd.f32 %v618, 1.0
    %v649 = vadd.f32 %v620, 1.0
    %v650 = vadd.f32 %v622, 1.0
    %v651 = vadd.f32 %v624, 1.0
    %v652 = vadd.f32 %v626, 1.0
    %v653 = vadd.f32 %v628, 1.0
    %v654 = vadd.f32 %v630, 1.0
    %v655 = vadd.f32 %v632, 1.0
    %v656 = vadd.f32 %v634, 1.0
    %v657 = vadd.f32 %v636, 1.0
    %v658 = vadd.f32 %v638, 1.0
    %v659 = vadd.f32 %v640, 1.0
    %v660 = vadd.f32 %v642, 1.0
    %v661 = vadd.f32 %v644, 1.0
    %v662 = vadd.f32 %v646, 1.0
    %v663 = vrcp.pop %v647
    %v664 = vmul.f32 1.0, %v663
    %v665 = vrcp.pop %v648
    %v666 = vmul.f32 1.0, %v665
    %v667 = vrcp.pop %v649
    %v668 = vmul.f32 1.0, %v667
    %v669 = vrcp.pop %v650
    %v670 = vmul.f32 1.0, %v669
    %v671 = vrcp.pop %v651
    %v672 = vmul.f32 1.0, %v671
    %v673 = vrcp.pop %v652
    %v674 = vmul.f32 1.0, %v673
    %v675 = vrcp.pop %v653
    %v676 = vmul.f32 1.0, %v675
    %v677 = vrcp.pop %v654
    %v678 = vmul.f32 1.0, %v677
    %v679 = vrcp.pop %v655
    %v680 = vmul.f32 1.0, %v679
    %v681 = vrcp.pop %v656
    %v682 = vmul.f32 1.0, %v681
    %v683 = vrcp.pop %v657
    %v684 = vmul.f32 1.0, %v683
    %v685 = vrcp.pop %v658
    %v686 = vmul.f32 1.0, %v685
    %v687 = vrcp.pop %v659
    %v688 = vmul.f32 1.0, %v687
    %v689 = vrcp.pop %v660
    %v690 = vmul.f32 1.0, %v689
    %v691 = vrcp.pop %v661
    %v692 = vmul.f32 1.0, %v691
    %v693 = vrcp.pop %v662
    %v694 = vmul.f32 1.0, %v693
    %v695 = vmul.f32 %v583, %v664
    %v696 = vmul.f32 %v584, %v666
    %v697 = vmul.f32 %v585, %v668
    %v698 = vmul.f32 %v586, %v670
    %v699 = vmul.f32 %v587, %v672
    %v700 = vmul.f32 %v588, %v674
    %v701 = vmul.f32 %v589, %v676
    %v702 = vmul.f32 %v590, %v678
    %v703 = vmul.f32 %v591, %v680
    %v704 = vmul.f32 %v592, %v682
    %v705 = vmul.f32 %v593, %v684
    %v706 = vmul.f32 %v594, %v686
    %v707 = vmul.f32 %v595, %v688
    %v708 = vmul.f32 %v596, %v690
    %v709 = vmul.f32 %v597, %v692
    %v710 = vmul.f32 %v598, %v694
    %v711 = vld [vmem:[%s1] sm:$0x1]
    %v712 = vpack.c.bf16 %v696, %v695
    %v713 = vpack.c.bf16 %v698, %v697
    %v714 = vpack.c.bf16 %v700, %v699
    %v715 = vpack.c.bf16 %v702, %v701
    %v716 = vpack.c.bf16 %v704, %v703
    %v717 = vpack.c.bf16 %v706, %v705
    %v718 = vpack.c.bf16 %v708, %v707
    %v719 = vpack.c.bf16 %v710, %v709
    %720 = vmatprep.subr.bf16.mxu0 0
    %721 = vmatpush1.bf16.msra.mxu0 %v712
    %722 = vmatprep.subr.bf16.mxu0 0
    %723 = vmatpush1.bf16.msra.mxu0 %v713
    %724 = vmatprep.subr.bf16.mxu0 0
    %725 = vmatpush1.bf16.msra.mxu0 %v714
    %726 = vmatprep.subr.bf16.mxu0 0
    %727 = vmatpush1.bf16.msra.mxu0 %v715
    %728 = vmatprep.subr.bf16.mxu0 0
    %729 = vmatpush1.bf16.msra.mxu0 %v716
    %730 = vmatprep.subr.bf16.mxu0 0
    %731 = vmatpush1.bf16.msra.mxu0 %v717
    %732 = vmatprep.subr.bf16.mxu0 0
    %733 = vmatpush1.bf16.msra.mxu0 %v718
    %734 = vmatprep.subr.bf16.mxu0 0
    %735 = vmatpush1.bf16.msra.mxu0 %v719
    %736 = vmatprep.subr.bf16.mxu0 0
    %737 = vmatpush1.bf16.msra.mxu0 0
    %738 = vmatprep.subr.bf16.mxu0 0
    %739 = vmatpush1.bf16.msra.mxu0 0
    %740 = vmatprep.subr.bf16.mxu0 0
    %741 = vmatpush1.bf16.msra.mxu0 0
    %742 = vmatprep.subr.bf16.mxu0 0
    %743 = vmatpush1.bf16.msra.mxu0 0
    %744 = vmatprep.subr.bf16.mxu0 0
    %745 = vmatpush1.bf16.msra.mxu0 0
    %746 = vmatprep.subr.bf16.mxu0 0
    %747 = vmatpush1.bf16.msra.mxu0 0
    %748 = vmatprep.subr.bf16.mxu0 0
    %749 = vmatpush1.bf16.msra.mxu0 0
    %750 = vmatprep.subr.bf16.mxu0 0
    %751 = vmatpush1.bf16.msra.mxu0 0
    %752 = vmatprep.mubr.bf16.mxu0 0
    %753 = vmatmul.mubr.bf16.gmra.mrb[0].mxu0 %v711
    %v754 = vpop.f32.mrb[0].mxu0
    %v755 = vadd.f32 0.0, %v754
    %v756 = vpop.f32.mrb[0].mxu0
    %v757 = vpop.f32.mrb[0].mxu0
    %v758 = vpop.f32.mrb[0].mxu0
    %759 = vdwg.mxu0
    %v760 = vpack.c.bf16 %v755, %v755
    %v761 = vld [vmem:[#allocation2] sm:$0xf]
    %v762 = vld [vmem:[#allocation2 + $0x4] sm:$0xf]
    %v763 = vld [vmem:[#allocation2 + $0x8] sm:$0xf]
    %v764 = vld [vmem:[#allocation2 + $0xc] sm:$0xf]
    %v765 = vld [vmem:[#allocation2 + $0x10] sm:$0xf]
    %v766 = vld [vmem:[#allocation2 + $0x14] sm:$0xf]
    %v767 = vld [vmem:[#allocation2 + $0x18] sm:$0xf]
    %v768 = vld [vmem:[#allocation2 + $0x1c] sm:$0xf]
    %v769 = vld [vmem:[%s2] sm:$0x1]
    %v770 = vld [vmem:[%s10] sm:$0xf]
    %v771 = vld [vmem:[%s10 + $0x4] sm:$0xf]
    %v772 = vld [vmem:[%s10 + $0x8] sm:$0xf]
    %v773 = vld [vmem:[%s10 + $0xc] sm:$0xf]
    %v774 = vld [vmem:[%s10 + $0x10] sm:$0xf]
    %v775 = vld [vmem:[%s10 + $0x14] sm:$0xf]
    %v776 = vld [vmem:[%s10 + $0x18] sm:$0xf]
    %v777 = vld [vmem:[%s10 + $0x1c] sm:$0xf]
    %v778 = vld [vmem:[%s10 + $0x20] sm:$0xf]
    %v779 = vld [vmem:[%s10 + $0x24] sm:$0xf]
    %v780 = vld [vmem:[%s10 + $0x28] sm:$0xf]
    %v781 = vld [vmem:[%s10 + $0x2c] sm:$0xf]
    %v794 = vunpack.c.l.b16 %v770
    %v795 = vunpack.c.l.b16 %v771
    %v796 = vunpack.c.l.b16 %v772
    %v797 = vunpack.c.l.b16 %v773
    %v798 = vunpack.c.l.b16 %v774
    %v799 = vunpack.c.l.b16 %v775
    %v800 = vunpack.c.l.b16 %v776
    %v801 = vunpack.c.l.b16 %v777
    %v802 = vunpack.c.l.b16 %v778
    %v803 = vunpack.c.l.b16 %v779
    %v804 = vunpack.c.l.b16 %v780
    %v805 = vunpack.c.l.b16 %v781
    %v806 = vpack.c.b16 %v795, %v794
    %v807 = vpack.c.b16 %v797, %v796
    %v808 = vpack.c.b16 %v799, %v798
    %v809 = vpack.c.b16 %v801, %v800
    %v810 = vpack.c.b16 %v803, %v802
    %v811 = vpack.c.b16 %v805, %v804
    %vm818 = vcmask 785408
    %v820 = vsel %vm818, %v769, 0
    %822 = vmatprep.subr.bf16.mxu0 0
    %823 = vmatpush1.bf16.msra.mxu0 %v806
    %824 = vmatprep.subr.bf16.mxu0 0
    %825 = vmatpush1.bf16.msra.mxu0 %v807
    %826 = vmatprep.subr.bf16.mxu0 0
    %827 = vmatpush1.bf16.msra.mxu0 %v808
    %828 = vmatprep.subr.bf16.mxu0 0
    %829 = vmatpush1.bf16.msra.mxu0 %v809
    %830 = vmatprep.subr.bf16.mxu0 0
    %831 = vmatpush1.bf16.msra.mxu0 %v810
    %832 = vmatprep.subr.bf16.mxu0 0
    %833 = vmatpush1.bf16.msra.mxu0 %v811
    %834 = vmatprep.subr.bf16.mxu0 0
    %835 = vmatpush1.bf16.msra.mxu0 0
    %836 = vmatprep.subr.bf16.mxu0 0
    %837 = vmatpush1.bf16.msra.mxu0 0
    %838 = vmatprep.subr.bf16.mxu0 0
    %839 = vmatpush1.bf16.msra.mxu0 0
    %840 = vmatprep.subr.bf16.mxu0 0
    %841 = vmatpush1.bf16.msra.mxu0 0
    %842 = vmatprep.subr.bf16.mxu0 0
    %843 = vmatpush1.bf16.msra.mxu0 0
    %844 = vmatprep.subr.bf16.mxu0 0
    %845 = vmatpush1.bf16.msra.mxu0 0
    %846 = vmatprep.subr.bf16.mxu0 0
    %847 = vmatpush1.bf16.msra.mxu0 0
    %848 = vmatprep.subr.bf16.mxu0 0
    %849 = vmatpush1.bf16.msra.mxu0 0
    %850 = vmatprep.subr.bf16.mxu0 0
    %851 = vmatpush1.bf16.msra.mxu0 0
    %852 = vmatprep.subr.bf16.mxu0 0
    %853 = vmatpush1.bf16.msra.mxu0 0
    %854 = vmatprep.mubr.bf16.mxu0 0
    %855 = vmatmul.mubr.bf16.gmra.mrb[0].mxu0 %v820
    %v856 = vpop.f32.mrb[0].mxu0
    %v857 = vadd.f32 0.0, %v856
    %v858 = vpop.f32.mrb[0].mxu0
    %v859 = vpop.f32.mrb[0].mxu0
    %v860 = vpop.f32.mrb[0].mxu0
    %861 = vdwg.mxu0
    %v870 = vunpack.c.l.b16 %v761
    %v871 = vunpack.c.l.b16 %v762
    %v872 = vunpack.c.l.b16 %v763
    %v873 = vunpack.c.l.b16 %v764
    %v874 = vunpack.c.l.b16 %v765
    %v875 = vunpack.c.l.b16 %v766
    %v876 = vunpack.c.l.b16 %v767
    %v877 = vunpack.c.l.b16 %v768
    %v878 = vpack.c.b16 %v871, %v870
    %v879 = vpack.c.b16 %v873, %v872
    %v880 = vpack.c.b16 %v875, %v874
    %v881 = vpack.c.b16 %v877, %v876
    %vm886 = vcmask 523264
    %v888 = vsel %vm886, %v760, 0
    %890 = vmatprep.subr.bf16.mxu0 0
    %891 = vmatpush1.bf16.msra.mxu0 %v878
    %892 = vmatprep.subr.bf16.mxu0 0
    %893 = vmatpush1.bf16.msra.mxu0 %v879
    %894 = vmatprep.subr.bf16.mxu0 0
    %895 = vmatpush1.bf16.msra.mxu0 %v880
    %896 = vmatprep.subr.bf16.mxu0 0
    %897 = vmatpush1.bf16.msra.mxu0 %v881
    %898 = vmatprep.subr.bf16.mxu0 0
    %899 = vmatpush1.bf16.msra.mxu0 0
    %900 = vmatprep.subr.bf16.mxu0 0
    %901 = vmatpush1.bf16.msra.mxu0 0
    %902 = vmatprep.subr.bf16.mxu0 0
    %903 = vmatpush1.bf16.msra.mxu0 0
    %904 = vmatprep.subr.bf16.mxu0 0
    %905 = vmatpush1.bf16.msra.mxu0 0
    %906 = vmatprep.subr.bf16.mxu0 0
    %907 = vmatpush1.bf16.msra.mxu0 0
    %908 = vmatprep.subr.bf16.mxu0 0
    %909 = vmatpush1.bf16.msra.mxu0 0
    %910 = vmatprep.subr.bf16.mxu0 0
    %911 = vmatpush1.bf16.msra.mxu0 0
    %912 = vmatprep.subr.bf16.mxu0 0
    %913 = vmatpush1.bf16.msra.mxu0 0
    %914 = vmatprep.subr.bf16.mxu0 0
    %915 = vmatpush1.bf16.msra.mxu0 0
    %916 = vmatprep.subr.bf16.mxu0 0
    %917 = vmatpush1.bf16.msra.mxu0 0
    %918 = vmatprep.subr.bf16.mxu0 0
    %919 = vmatpush1.bf16.msra.mxu0 0
    %920 = vmatprep.subr.bf16.mxu0 0
    %921 = vmatpush1.bf16.msra.mxu0 0
    %922 = vmatprep.mubr.bf16.mxu0 0
    %923 = vmatmul.mubr.bf16.gmra.mrb[0].mxu0 %v888
    %v924 = vpop.f32.mrb[0].mxu0
    %v925 = vadd.f32 %v857, %v924
    %v926 = vpop.f32.mrb[0].mxu0
    %v927 = vpop.f32.mrb[0].mxu0
    %v928 = vpop.f32.mrb[0].mxu0
    %929 = vdwg.mxu0
    %v930 = vld [vmem:[%s11] sm:$0x1]
    %v932 = vlaneseq
    %v933 = vshrl.u32 %v932, 7
    %v934 = vsub.s32 0, %v933
    %v935 = vrot.slane %v930, %v934
    %v937 = vadd.f32 %v925, %v935
    %v938 = vmax.f32 %v937, 0.0
    %v939 = vpack.c.bf16 %v938, %v938
    %v940 = vld [vmem:[%s12] sm:$0xf]
    %v941 = vld [vmem:[%s12 + $0x4] sm:$0xf]
    %v942 = vld [vmem:[%s12 + $0x8] sm:$0xf]
    %v943 = vld [vmem:[%s12 + $0xc] sm:$0xf]
    %v944 = vld [vmem:[%s12 + $0x10] sm:$0xf]
    %v945 = vld [vmem:[%s12 + $0x14] sm:$0xf]
    %v946 = vld [vmem:[%s12 + $0x18] sm:$0xf]
    %v947 = vld [vmem:[%s12 + $0x1c] sm:$0xf]
    %v948 = vld [vmem:[%s12 + $0x20] sm:$0xf]
    %v949 = vld [vmem:[%s12 + $0x24] sm:$0xf]
    %v950 = vld [vmem:[%s12 + $0x28] sm:$0xf]
    %v951 = vld [vmem:[%s12 + $0x2c] sm:$0xf]
    %v952 = vld [vmem:[%s12 + $0x30] sm:$0xf]
    %v953 = vld [vmem:[%s12 + $0x34] sm:$0xf]
    %v954 = vld [vmem:[%s12 + $0x38] sm:$0xf]
    %v955 = vld [vmem:[%s12 + $0x3c] sm:$0xf]
    %v956 = vld [vmem:[%s13] sm:$0x1]
    %v958 = vlaneseq
    %v959 = vshrl.u32 %v958, 7
    %v960 = vsub.s32 0, %v959
    %v961 = vrot.slane %v956, %v960
    %v979 = vunpack.c.l.b16 %v940
    %v980 = vunpack.c.l.b16 %v941
    %v981 = vunpack.c.l.b16 %v942
    %v982 = vunpack.c.l.b16 %v943
    %v983 = vunpack.c.l.b16 %v944
    %v984 = vunpack.c.l.b16 %v945
    %v985 = vunpack.c.l.b16 %v946
    %v986 = vunpack.c.l.b16 %v947
    %v987 = vunpack.c.l.b16 %v948
    %v988 = vunpack.c.l.b16 %v949
    %v989 = vunpack.c.l.b16 %v950
    %v990 = vunpack.c.l.b16 %v951
    %v991 = vunpack.c.l.b16 %v952
    %v992 = vunpack.c.l.b16 %v953
    %v993 = vunpack.c.l.b16 %v954
    %v994 = vunpack.c.l.b16 %v955
    %v995 = vpack.c.b16 %v980, %v979
    %v996 = vpack.c.b16 %v982, %v981
    %v997 = vpack.c.b16 %v984, %v983
    %v998 = vpack.c.b16 %v986, %v985
    %v999 = vpack.c.b16 %v988, %v987
    %v1000 = vpack.c.b16 %v990, %v989
    %v1001 = vpack.c.b16 %v992, %v991
    %v1002 = vpack.c.b16 %v994, %v993
    %1011 = vmatprep.subr.bf16.mxu0 0
    %1012 = vmatpush1.bf16.msra.mxu0 %v995
    %1013 = vmatprep.subr.bf16.mxu0 0
    %1014 = vmatpush1.bf16.msra.mxu0 %v996
    %1015 = vmatprep.subr.bf16.mxu0 0
    %1016 = vmatpush1.bf16.msra.mxu0 %v997
    %1017 = vmatprep.subr.bf16.mxu0 0
    %1018 = vmatpush1.bf16.msra.mxu0 %v998
    %1019 = vmatprep.subr.bf16.mxu0 0
    %1020 = vmatpush1.bf16.msra.mxu0 %v999
    %1021 = vmatprep.subr.bf16.mxu0 0
    %1022 = vmatpush1.bf16.msra.mxu0 %v1000
    %1023 = vmatprep.subr.bf16.mxu0 0
    %1024 = vmatpush1.bf16.msra.mxu0 %v1001
    %1025 = vmatprep.subr.bf16.mxu0 0
    %1026 = vmatpush1.bf16.msra.mxu0 %v1002
    %1027 = vmatprep.subr.bf16.mxu0 0
    %1028 = vmatpush1.bf16.msra.mxu0 0
    %1029 = vmatprep.subr.bf16.mxu0 0
    %1030 = vmatpush1.bf16.msra.mxu0 0
    %1031 = vmatprep.subr.bf16.mxu0 0
    %1032 = vmatpush1.bf16.msra.mxu0 0
    %1033 = vmatprep.subr.bf16.mxu0 0
    %1034 = vmatpush1.bf16.msra.mxu0 0
    %1035 = vmatprep.subr.bf16.mxu0 0
    %1036 = vmatpush1.bf16.msra.mxu0 0
    %1037 = vmatprep.subr.bf16.mxu0 0
    %1038 = vmatpush1.bf16.msra.mxu0 0
    %1039 = vmatprep.subr.bf16.mxu0 0
    %1040 = vmatpush1.bf16.msra.mxu0 0
    %1041 = vmatprep.subr.bf16.mxu0 0
    %1042 = vmatpush1.bf16.msra.mxu0 0
    %1043 = vmatprep.mubr.bf16.mxu0 0
    %1044 = vmatmul.mubr.bf16.gmra.mrb[0].mxu0 %v939
    %v1045 = vpop.f32.mrb[0].mxu0
    %v1046 = vadd.f32 %v961, %v1045
    %v1047 = vpop.f32.mrb[0].mxu0
    %v1048 = vpop.f32.mrb[0].mxu0
    %v1049 = vpop.f32.mrb[0].mxu0
    %1050 = vdwg.mxu0
    %1051 = vst [vmem:[#allocation5] sm:$0x3] %v1046
    // Predicated region
    $region62: #{tpu_custom_call.1} parent=1 // pred_check
      _
    $region63: #{tpu_custom_call.1} parent=1 // pred_check_branch
      %1053 = sbr.rel (0) target = $region65
    $region64: #{tpu_custom_call.1} parent=1 // pred_region
      %s1055 = ssub.s32 32, 32
      %1056 = vsyncadd [#allocation4], %s1055
      %s1058 = sshll.u32 [#allocation5], 4
      %s1059 = int_to_ptr.vmem [resolvable:$true] %s1058
      %1061 = dma.vmem_to_hbm [thread:$0]  %s1059, 32, %s14, [#allocation4]
    $region65: #{tpu_custom_call.1} parent=1 // pred_fallthru
      _
    // Predicated region
    $region66: #{tpu_custom_call.1} parent=1 // pred_check
      _
    $region67: #{tpu_custom_call.1} parent=1 // pred_check_branch
      %1063 = sbr.rel (0) target = $region69
    $region68: #{tpu_custom_call.1} parent=1 // pred_region
      %1064 = dma.done [#allocation4], 32
    $region69: #{tpu_custom_call.1} parent=1 // pred_fallthru
      _
    %1065 = vsyncpa [#allocation3], 1
    %1066 = vsyncpa [#allocation4], 1

</llo_original>
